<compile_context>
chip_gen: v5e
topology: v5e:2x2
jax: 0.10.0
libtpu: 0.0.40
codegen_flags: <defaults>
</compile_context>

<pallas_src>
import functools

import jax
import jax.numpy as jnp
from jax.experimental import pallas as pl
from jax.experimental.pallas import tpu as pltpu


def _dwsep_kernel(x_ref, wd_ref, wp_ref, o_ref, *, W):
    """One H-strip of one image, spatial-in-lanes layout.

    x_ref : (Cin, S, TH*W)  full image of this batch element (flat spatial, split into
                            S strips of TH rows), resident in VMEM.
    wd_ref: (Cin, 9)        depthwise 3x3 taps, tap index k = kh*3 + kw.
    wp_ref: (Cout, Cin)     pointwise 1x1 weights.
    o_ref : (Cout, TH*W)    lane-dense output strip.
    """
    cin, n_strips, thw = x_ref.shape
    cout = o_ref.shape[0]
    f32 = jnp.float32

    s = pl.program_id(1)

    # Strip + its two halo neighbours (clamped, always in-bounds loads; zero-selected at
    # the image border).  The dynamic index is on the second-minor dim (sublane select).
    mid = x_ref[:, s, :].astype(f32)                                     # (Cin, THW)
    prev = x_ref[:, jnp.maximum(s - 1, 0), :].astype(f32)
    nxt = x_ref[:, jnp.minimum(s + 1, n_strips - 1), :].astype(f32)

    top = jnp.where(s > 0, prev[:, thw - W:], 0.0)                       # row above strip
    bot = jnp.where(s < n_strips - 1, nxt[:, :W], 0.0)                   # row below strip

    # Halo'd strip in flat layout, +1 zero element at each end so all 9 tap windows are
    # static, in-bounds lane slices.
    zcol = jnp.zeros((cin, 1), f32)
    xh = jnp.concatenate([zcol, top, mid, bot, zcol], axis=1)            # (Cin, THW+2W+2)

    # Left/right (W) border masks for the flattened-rows layout: a +/-1 lane shift would
    # otherwise leak the neighbouring row's edge pixel.
    col = jax.lax.broadcasted_iota(jnp.int32, (1, thw), 1) % W
    mask_l = (col > 0).astype(f32)                                       # tap ow = -1
    mask_r = (col < W - 1).astype(f32)                                   # tap ow = +1

    # Depthwise 3x3: 9 shifted lane windows x per-channel tap weight (VPU).
    wdv = wd_ref[...].astype(f32)                                        # (Cin, 9)
    acc = jnp.zeros((cin, thw), f32)
    for oh in (-1, 0, 1):
        for ow in (-1, 0, 1):
            k = (oh + 1) * 3 + (ow + 1)
            off = 1 + (oh + 1) * W + ow
            win = xh[:, off:off + thw]                                   # (Cin, THW)
            if ow == -1:
                win = win * mask_l
            elif ow == 1:
                win = win * mask_r
            acc = acc + wdv[:, k:k + 1] * win

    # Pointwise 1x1.  For tiny Cin/Cout the MXU would run at <1% utilisation (K and M
    # pad to 128/256), so use Cin broadcast-FMAs on the VPU; large Cin uses the MXU.
    wpv = wp_ref[...].astype(f32)                                        # (Cout, Cin)
    if cin <= 32:
        y = jnp.zeros((cout, thw), f32)
        for ci in range(cin):
            y = y + wpv[:, ci:ci + 1] * acc[ci:ci + 1, :]                # (Cout,1)*(1,THW)
    else:
        y = jnp.dot(wpv, acc, preferred_element_type=jnp.float32)

    o_ref[...] = y.astype(o_ref.dtype)


def _pick_tile_h(H, W):
    """Smallest H-strip whose flat width TH*W is a multiple of 128 lanes."""
    divs = [d for d in range(1, H + 1) if H % d == 0]
    for min_lanes in (512, 128):
        for d in divs:
            if (d * W) % 128 == 0 and d * W >= min_lanes:
                return d
    return H      # single strip; block == full dim is always a legal block shape


def depthwise_separable_conv(x_nchw, w_depth, w_point):
    """x: (N, Cin, H, W); w_depth: (Cin,1,3,3); w_point: (Cout,Cin,1,1) -> (N,Cout,H,W)."""
    N, Cin, H, W = x_nchw.shape
    Cout = w_point.shape[0]
    HW = H * W

    TH = _pick_tile_h(H, W)
    S = H // TH
    THW = TH * W

    # Metadata-only reshapes (no transpose, no padding copy in HBM).
    x_r = x_nchw.reshape(N, Cin, S, THW)
    wd = w_depth.reshape(Cin, 9)
    wp = w_point.reshape(Cout, Cin)

    itemsize = x_nchw.dtype.itemsize
    vmem_limit = int(min(max(4 * Cin * HW * itemsize + 8 * Cout * THW * itemsize
                             + (8 << 20), 32 << 20), 100 << 20))
    # TODO(synk): for images whose resident (Cin, H*W) slab approaches the VMEM limit
    # (notably v7x's 64 MiB), switch the input to a manually double-buffered DMA of
    # (strip + 1-row halo) instead of keeping the whole image resident.

    out_flat = pl.pallas_call(
        functools.partial(_dwsep_kernel, W=W),
        out_shape=jax.ShapeDtypeStruct((N, Cout, HW), x_nchw.dtype),
        grid_spec=pltpu.PrefetchScalarGridSpec(
            num_scalar_prefetch=0,
            grid=(N, S),
            in_specs=[
                # Full image per batch element; index map ignores s, so it is DMA'd once
                # per image and stays resident in VMEM across that image's strips.
                pl.BlockSpec((None, Cin, S, THW), lambda n, s: (n, 0, 0, 0)),
                pl.BlockSpec((Cin, 9), lambda n, s: (0, 0)),
                pl.BlockSpec((Cout, Cin), lambda n, s: (0, 0)),
            ],
            # Lane-dense output strip: last block dim is TH*W (multiple of 128).
            out_specs=pl.BlockSpec((None, Cout, THW), lambda n, s: (n, 0, s)),
        ),
        compiler_params=pltpu.CompilerParams(
            dimension_semantics=("parallel", "parallel"),
            vmem_limit_bytes=vmem_limit),
    )(x_r, wd, wp)

    return out_flat.reshape(N, Cout, H, W)


def _reference(x_nchw, w_depth, w_point):
    """Plain-JAX reference matching nn.Conv2d semantics (sanity check)."""
    Cin = x_nchw.shape[1]
    y = jax.lax.conv_general_dilated(
        x_nchw, w_depth, window_strides=(1, 1), padding=((1, 1), (1, 1)),
        feature_group_count=Cin,
        dimension_numbers=("NCHW", "OIHW", "NCHW"))
    z = jax.lax.conv_general_dilated(
        y, w_point, window_strides=(1, 1), padding=((0, 0), (0, 0)),
        dimension_numbers=("NCHW", "OIHW", "NCHW"))
    return z


if __name__ == "__main__":
    N, C_IN, C_OUT, H, W = 2, 4, 8, 16, 16

    key = jax.random.PRNGKey(0)
    k_x, k_d, k_p = jax.random.split(key, 3)

    x = jax.random.normal(k_x, (N, C_IN, H, W), dtype=jnp.float32)
    # Deterministic synthetic parameters (same shapes as the PyTorch module's weights).
    w_depth = jax.random.normal(k_d, (C_IN, 1, 3, 3), dtype=jnp.float32) * 0.1
    w_point = jax.random.normal(k_p, (C_OUT, C_IN, 1, 1), dtype=jnp.float32) * 0.1

    out = jax.block_until_ready(depthwise_separable_conv(x, w_depth, w_point))
    ref = jax.block_until_ready(_reference(x, w_depth, w_point))

    assert out.shape == (N, C_OUT, H, W), out.shape
    assert jnp.allclose(out, ref, atol=1e-4, rtol=1e-4), float(jnp.max(jnp.abs(out - ref)))

    print("KERNEL_OK")
</pallas_src>

<mosaic_0001>
module attributes {stable_mosaic.version = 11 : i64} {
  func.func @_dwsep_kernel(%arg0: i32, %arg1: i32, %arg2: memref<1x4x2x128xf32, #tpu.memory_space<vmem>>, %arg3: memref<4x9xf32, #tpu.memory_space<vmem>>, %arg4: memref<8x4xf32, #tpu.memory_space<vmem>>, %arg5: memref<1x8x128xf32, #tpu.memory_space<vmem>>) attributes {dimension_semantics = [#tpu.dimension_semantics<parallel>, #tpu.dimension_semantics<parallel>], iteration_bounds = array<i64: 2, 2>, scalar_prefetch = 0 : i64, scratch_operands = 0 : i64, tpu.core_type = #tpu.core_type<tc>, window_params = [{transform_indices = @transform_0, window_bounds = array<i64: 1, 4, 2, 128>}, {pipeline_mode = #tpu.pipeline_mode<synchronous>, transform_indices = @transform_1, window_bounds = array<i64: 4, 9>}, {pipeline_mode = #tpu.pipeline_mode<synchronous>, transform_indices = @transform_2, window_bounds = array<i64: 8, 4>}, {transform_indices = @transform_3, window_bounds = array<i64: 1, 8, 128>}]} {
    %c0 = arith.constant 0 : index
    %c0_0 = arith.constant 0 : index
    %0 = arith.index_cast %arg1 : i32 to index
    %c0_1 = arith.constant 0 : index
    %1 = vector.load %arg2[%c0, %c0_0, %0, %c0_1] : memref<1x4x2x128xf32, #tpu.memory_space<vmem>>, vector<1x4x1x128xf32>
    %2 = vector.shape_cast %1 : vector<1x4x1x128xf32> to vector<4x128xf32>
    %c1_i32 = arith.constant 1 : i32
    %3 = arith.subi %arg1, %c1_i32 : i32
    %c0_i32 = arith.constant 0 : i32
    %4 = arith.maxsi %3, %c0_i32 : i32
    %c0_2 = arith.constant 0 : index
    %c0_3 = arith.constant 0 : index
    %5 = arith.index_cast %4 : i32 to index
    %c0_4 = arith.constant 0 : index
    %6 = vector.load %arg2[%c0_2, %c0_3, %5, %c0_4] : memref<1x4x2x128xf32, #tpu.memory_space<vmem>>, vector<1x4x1x128xf32>
    %7 = vector.shape_cast %6 : vector<1x4x1x128xf32> to vector<4x128xf32>
    %c1_i32_5 = arith.constant 1 : i32
    %8 = arith.addi %arg1, %c1_i32_5 : i32
    %c1_i32_6 = arith.constant 1 : i32
    %9 = arith.minsi %8, %c1_i32_6 : i32
    %c0_7 = arith.constant 0 : index
    %c0_8 = arith.constant 0 : index
    %10 = arith.index_cast %9 : i32 to index
    %c0_9 = arith.constant 0 : index
    %11 = vector.load %arg2[%c0_7, %c0_8, %10, %c0_9] : memref<1x4x2x128xf32, #tpu.memory_space<vmem>>, vector<1x4x1x128xf32>
    %12 = vector.shape_cast %11 : vector<1x4x1x128xf32> to vector<4x128xf32>
    %c0_i32_10 = arith.constant 0 : i32
    %13 = arith.cmpi sgt, %arg1, %c0_i32_10 : i32
    %14 = vector.extract_strided_slice %7 {offsets = [0, 112], sizes = [4, 16], strides = [1, 1]} : vector<4x128xf32> to vector<4x16xf32>
    %cst = arith.constant 0.000000e+00 : f32
    %15 = vector.broadcast %cst : f32 to vector<4x16xf32>
    %16 = arith.select %13, %14, %15 : vector<4x16xf32>
    %c1_i32_11 = arith.constant 1 : i32
    %17 = arith.cmpi slt, %arg1, %c1_i32_11 : i32
    %18 = vector.extract_strided_slice %12 {offsets = [0, 0], sizes = [4, 16], strides = [1, 1]} : vector<4x128xf32> to vector<4x16xf32>
    %cst_12 = arith.constant 0.000000e+00 : f32
    %19 = vector.broadcast %cst_12 : f32 to vector<4x16xf32>
    %20 = arith.select %17, %18, %19 : vector<4x16xf32>
    %cst_13 = arith.constant 0.000000e+00 : f32
    %21 = vector.broadcast %cst_13 : f32 to vector<4x1xf32>
    %22 = tpu.concatenate %21, %16, %2, %20, %21 in 1 : vector<4x1xf32>, vector<4x16xf32>, vector<4x128xf32>, vector<4x16xf32>, vector<4x1xf32> -> vector<4x162xf32>
    %23 = tpu.iota {dimensions = array<i32: 1>} : vector<1x128xi32>
    %c16_i32 = arith.constant 16 : i32
    %c0_i32_14 = arith.constant 0 : i32
    %24 = arith.cmpi eq, %c16_i32, %c0_i32_14 : i32
    %c1_i32_15 = arith.constant 1 : i32
    %25 = arith.select %24, %c1_i32_15, %c16_i32 : i32
    %26 = vector.broadcast %25 : i32 to vector<1x128xi32>
    %27 = arith.remsi %23, %26 : vector<1x128xi32>
    %c0_i32_16 = arith.constant 0 : i32
    %28 = vector.broadcast %c0_i32_16 : i32 to vector<1x128xi32>
    %29 = arith.cmpi ne, %27, %28 : vector<1x128xi32>
    %c0_i32_17 = arith.constant 0 : i32
    %30 = vector.broadcast %c0_i32_17 : i32 to vector<1x128xi32>
    %31 = arith.cmpi slt, %27, %30 : vector<1x128xi32>
    %c0_i32_18 = arith.constant 0 : i32
    %32 = arith.cmpi slt, %25, %c0_i32_18 : i32
    %33 = vector.broadcast %32 : i1 to vector<1x128xi1>
    %34 = vector.broadcast %33 : vector<1x128xi1> to vector<1x128xi1>
    %35 = arith.xori %31, %34 : vector<1x128xi1>
    %36 = arith.andi %35, %29 : vector<1x128xi1>
    %37 = vector.broadcast %25 : i32 to vector<1x128xi32>
    %38 = arith.addi %27, %37 : vector<1x128xi32>
    %39 = arith.select %36, %38, %27 : vector<1x128xi1>, vector<1x128xi32>
    %c0_i32_19 = arith.constant 0 : i32
    %40 = vector.broadcast %c0_i32_19 : i32 to vector<1x128xi32>
    %41 = arith.cmpi sgt, %39, %40 : vector<1x128xi32>
    %42 = arith.extui %41 : vector<1x128xi1> to vector<1x128xi32>
    %43 = arith.sitofp %42 : vector<1x128xi32> to vector<1x128xf32>
    %c15_i32 = arith.constant 15 : i32
    %44 = vector.broadcast %c15_i32 : i32 to vector<1x128xi32>
    %45 = arith.cmpi slt, %39, %44 : vector<1x128xi32>
    %46 = arith.extui %45 : vector<1x128xi1> to vector<1x128xi32>
    %47 = arith.sitofp %46 : vector<1x128xi32> to vector<1x128xf32>
    %c0_20 = arith.constant 0 : index
    %c0_21 = arith.constant 0 : index
    %48 = vector.load %arg3[%c0_20, %c0_21] : memref<4x9xf32, #tpu.memory_space<vmem>>, vector<4x9xf32>
    %cst_22 = arith.constant 0.000000e+00 : f32
    %49 = vector.broadcast %cst_22 : f32 to vector<4x128xf32>
    %50 = vector.extract_strided_slice %22 {offsets = [0, 0], sizes = [4, 128], strides = [1, 1]} : vector<4x162xf32> to vector<4x128xf32>
    %51 = vector.broadcast %43 : vector<1x128xf32> to vector<4x128xf32>
    %52 = arith.mulf %50, %51 : vector<4x128xf32>
    %53 = vector.extract_strided_slice %48 {offsets = [0, 0], sizes = [4, 1], strides = [1, 1]} : vector<4x9xf32> to vector<4x1xf32>
    %54 = vector.broadcast %53 : vector<4x1xf32> to vector<4x128xf32>
    %55 = arith.mulf %54, %52 : vector<4x128xf32>
    %56 = arith.addf %49, %55 : vector<4x128xf32>
    %57 = vector.extract_strided_slice %22 {offsets = [0, 1], sizes = [4, 128], strides = [1, 1]} : vector<4x162xf32> to vector<4x128xf32>
    %58 = vector.extract_strided_slice %48 {offsets = [0, 1], sizes = [4, 1], strides = [1, 1]} : vector<4x9xf32> to vector<4x1xf32>
    %59 = vector.broadcast %58 : vector<4x1xf32> to vector<4x128xf32>
    %60 = arith.mulf %59, %57 : vector<4x128xf32>
    %61 = arith.addf %56, %60 : vector<4x128xf32>
    %62 = vector.extract_strided_slice %22 {offsets = [0, 2], sizes = [4, 128], strides = [1, 1]} : vector<4x162xf32> to vector<4x128xf32>
    %63 = vector.broadcast %47 : vector<1x128xf32> to vector<4x128xf32>
    %64 = arith.mulf %62, %63 : vector<4x128xf32>
    %65 = vector.extract_strided_slice %48 {offsets = [0, 2], sizes = [4, 1], strides = [1, 1]} : vector<4x9xf32> to vector<4x1xf32>
    %66 = vector.broadcast %65 : vector<4x1xf32> to vector<4x128xf32>
    %67 = arith.mulf %66, %64 : vector<4x128xf32>
    %68 = arith.addf %61, %67 : vector<4x128xf32>
    %69 = vector.extract_strided_slice %22 {offsets = [0, 16], sizes = [4, 128], strides = [1, 1]} : vector<4x162xf32> to vector<4x128xf32>
    %70 = vector.broadcast %43 : vector<1x128xf32> to vector<4x128xf32>
    %71 = arith.mulf %69, %70 : vector<4x128xf32>
    %72 = vector.extract_strided_slice %48 {offsets = [0, 3], sizes = [4, 1], strides = [1, 1]} : vector<4x9xf32> to vector<4x1xf32>
    %73 = vector.broadcast %72 : vector<4x1xf32> to vector<4x128xf32>
    %74 = arith.mulf %73, %71 : vector<4x128xf32>
    %75 = arith.addf %68, %74 : vector<4x128xf32>
    %76 = vector.extract_strided_slice %22 {offsets = [0, 17], sizes = [4, 128], strides = [1, 1]} : vector<4x162xf32> to vector<4x128xf32>
    %77 = vector.extract_strided_slice %48 {offsets = [0, 4], sizes = [4, 1], strides = [1, 1]} : vector<4x9xf32> to vector<4x1xf32>
    %78 = vector.broadcast %77 : vector<4x1xf32> to vector<4x128xf32>
    %79 = arith.mulf %78, %76 : vector<4x128xf32>
    %80 = arith.addf %75, %79 : vector<4x128xf32>
    %81 = vector.extract_strided_slice %22 {offsets = [0, 18], sizes = [4, 128], strides = [1, 1]} : vector<4x162xf32> to vector<4x128xf32>
    %82 = vector.broadcast %47 : vector<1x128xf32> to vector<4x128xf32>
    %83 = arith.mulf %81, %82 : vector<4x128xf32>
    %84 = vector.extract_strided_slice %48 {offsets = [0, 5], sizes = [4, 1], strides = [1, 1]} : vector<4x9xf32> to vector<4x1xf32>
    %85 = vector.broadcast %84 : vector<4x1xf32> to vector<4x128xf32>
    %86 = arith.mulf %85, %83 : vector<4x128xf32>
    %87 = arith.addf %80, %86 : vector<4x128xf32>
    %88 = vector.extract_strided_slice %22 {offsets = [0, 32], sizes = [4, 128], strides = [1, 1]} : vector<4x162xf32> to vector<4x128xf32>
    %89 = vector.broadcast %43 : vector<1x128xf32> to vector<4x128xf32>
    %90 = arith.mulf %88, %89 : vector<4x128xf32>
    %91 = vector.extract_strided_slice %48 {offsets = [0, 6], sizes = [4, 1], strides = [1, 1]} : vector<4x9xf32> to vector<4x1xf32>
    %92 = vector.broadcast %91 : vector<4x1xf32> to vector<4x128xf32>
    %93 = arith.mulf %92, %90 : vector<4x128xf32>
    %94 = arith.addf %87, %93 : vector<4x128xf32>
    %95 = vector.extract_strided_slice %22 {offsets = [0, 33], sizes = [4, 128], strides = [1, 1]} : vector<4x162xf32> to vector<4x128xf32>
    %96 = vector.extract_strided_slice %48 {offsets = [0, 7], sizes = [4, 1], strides = [1, 1]} : vector<4x9xf32> to vector<4x1xf32>
    %97 = vector.broadcast %96 : vector<4x1xf32> to vector<4x128xf32>
    %98 = arith.mulf %97, %95 : vector<4x128xf32>
    %99 = arith.addf %94, %98 : vector<4x128xf32>
    %100 = vector.extract_strided_slice %22 {offsets = [0, 34], sizes = [4, 128], strides = [1, 1]} : vector<4x162xf32> to vector<4x128xf32>
    %101 = vector.broadcast %47 : vector<1x128xf32> to vector<4x128xf32>
    %102 = arith.mulf %100, %101 : vector<4x128xf32>
    %103 = vector.extract_strided_slice %48 {offsets = [0, 8], sizes = [4, 1], strides = [1, 1]} : vector<4x9xf32> to vector<4x1xf32>
    %104 = vector.broadcast %103 : vector<4x1xf32> to vector<4x128xf32>
    %105 = arith.mulf %104, %102 : vector<4x128xf32>
    %106 = arith.addf %99, %105 : vector<4x128xf32>
    %c0_23 = arith.constant 0 : index
    %c0_24 = arith.constant 0 : index
    %107 = vector.load %arg4[%c0_23, %c0_24] : memref<8x4xf32, #tpu.memory_space<vmem>>, vector<8x4xf32>
    %cst_25 = arith.constant 0.000000e+00 : f32
    %108 = vector.broadcast %cst_25 : f32 to vector<8x128xf32>
    %109 = vector.extract_strided_slice %107 {offsets = [0, 0], sizes = [8, 1], strides = [1, 1]} : vector<8x4xf32> to vector<8x1xf32>
    %110 = vector.extract_strided_slice %106 {offsets = [0, 0], sizes = [1, 128], strides = [1, 1]} : vector<4x128xf32> to vector<1x128xf32>
    %111 = vector.broadcast %109 : vector<8x1xf32> to vector<8x128xf32>
    %112 = vector.broadcast %110 : vector<1x128xf32> to vector<8x128xf32>
    %113 = arith.mulf %111, %112 : vector<8x128xf32>
    %114 = arith.addf %108, %113 : vector<8x128xf32>
    %115 = vector.extract_strided_slice %107 {offsets = [0, 1], sizes = [8, 1], strides = [1, 1]} : vector<8x4xf32> to vector<8x1xf32>
    %116 = vector.extract_strided_slice %106 {offsets = [1, 0], sizes = [1, 128], strides = [1, 1]} : vector<4x128xf32> to vector<1x128xf32>
    %117 = vector.broadcast %115 : vector<8x1xf32> to vector<8x128xf32>
    %118 = vector.broadcast %116 : vector<1x128xf32> to vector<8x128xf32>
    %119 = arith.mulf %117, %118 : vector<8x128xf32>
    %120 = arith.addf %114, %119 : vector<8x128xf32>
    %121 = vector.extract_strided_slice %107 {offsets = [0, 2], sizes = [8, 1], strides = [1, 1]} : vector<8x4xf32> to vector<8x1xf32>
    %122 = vector.extract_strided_slice %106 {offsets = [2, 0], sizes = [1, 128], strides = [1, 1]} : vector<4x128xf32> to vector<1x128xf32>
    %123 = vector.broadcast %121 : vector<8x1xf32> to vector<8x128xf32>
    %124 = vector.broadcast %122 : vector<1x128xf32> to vector<8x128xf32>
    %125 = arith.mulf %123, %124 : vector<8x128xf32>
    %126 = arith.addf %120, %125 : vector<8x128xf32>
    %127 = vector.extract_strided_slice %107 {offsets = [0, 3], sizes = [8, 1], strides = [1, 1]} : vector<8x4xf32> to vector<8x1xf32>
    %128 = vector.extract_strided_slice %106 {offsets = [3, 0], sizes = [1, 128], strides = [1, 1]} : vector<4x128xf32> to vector<1x128xf32>
    %129 = vector.broadcast %127 : vector<8x1xf32> to vector<8x128xf32>
    %130 = vector.broadcast %128 : vector<1x128xf32> to vector<8x128xf32>
    %131 = arith.mulf %129, %130 : vector<8x128xf32>
    %132 = arith.addf %126, %131 : vector<8x128xf32>
    %c0_26 = arith.constant 0 : index
    %c0_27 = arith.constant 0 : index
    %c0_28 = arith.constant 0 : index
    %133 = vector.load %arg5[%c0_26, %c0_27, %c0_28] : memref<1x8x128xf32, #tpu.memory_space<vmem>>, vector<1x8x128xf32>
    %134 = vector.shape_cast %133 : vector<1x8x128xf32> to vector<8x128xf32>
    %135 = vector.shape_cast %132 : vector<8x128xf32> to vector<1x8x128xf32>
    tpu.vector_store %arg5[%c0_26, %c0_27, %c0_28], %135 {strides = array<i32>} : memref<1x8x128xf32, #tpu.memory_space<vmem>>, vector<1x8x128xf32>,
    return
  }
  func.func @transform_0(%arg0: i32, %arg1: i32) -> (i32, i32, i32, i32) {
    %c0_i32 = arith.constant 0 : i32
    %c0_i32_0 = arith.constant 0 : i32
    %c0_i32_1 = arith.constant 0 : i32
    %c0_i32_2 = arith.constant 0 : i32
    return %arg0, %c0_i32, %c0_i32_0, %c0_i32_1 : i32, i32, i32, i32
  }
  func.func @transform_1(%arg0: i32, %arg1: i32) -> (i32, i32) {
    %c0_i32 = arith.constant 0 : i32
    %c0_i32_0 = arith.constant 0 : i32
    %c0_i32_1 = arith.constant 0 : i32
    return %c0_i32, %c0_i32_0 : i32, i32
  }
  func.func @transform_2(%arg0: i32, %arg1: i32) -> (i32, i32) {
    %c0_i32 = arith.constant 0 : i32
    %c0_i32_0 = arith.constant 0 : i32
    %c0_i32_1 = arith.constant 0 : i32
    return %c0_i32, %c0_i32_0 : i32, i32
  }
  func.func @transform_3(%arg0: i32, %arg1: i32) -> (i32, i32, i32) {
    %c0_i32 = arith.constant 0 : i32
    %c0_i32_0 = arith.constant 0 : i32
    return %arg0, %c0_i32, %arg1 : i32, i32, i32
  }
}

</mosaic_0001>

<llo_original>
// kernel: tpu_custom_call.1
$region0: #{tpu_custom_call.1}
  #allocation0 [shape = 'u32[]', space=smem, size = 0x4, offset = 0x4, fixed_abs, tag = 'smem constant byte address 0x4 - core index']
  #allocation1 [shape = 'u32[72,128]{1,0:T(1,128)}', space=vmem, size = 0x9000, scoped, tag = 'internal scratch']
  %s0 = inlined_call_operand.hbm [shape: f32[2,4,2,128], index: 0, kind: input, shape index: {}]
  %s1 = inlined_call_operand.vmem [shape: f32[4,9], index: 1, kind: input, shape index: {}]
  %s2 = inlined_call_operand.vmem [shape: f32[8,4], index: 2, kind: input, shape index: {}]
  %s3 = inlined_call_operand.hbm [shape: f32[2,8,256], index: 3, kind: output, shape index: {}]
  %s4 = sld [smem:[#allocation0]]
  $region49: #{tpu_custom_call.1} parent=0
    _
  %s6 = ssub.s32 1, %s4
  %s7 = scalar_select 0, %s6, %s4
  $region1: #{tpu_custom_call.1} parent=0
    #allocation2 [shape = 'u8[8192]{0}', space=vmem, size = 0x2000, scoped, tag = 'input window, operand 0']
    #allocation3 [shape = 's32[2]{0}', space=sflag, size = 0x8, scoped, tag = 'scoped memory for tpu_custom_call.1']
    #allocation4 [shape = 's32[2]{0}', space=sflag, size = 0x8, scoped, tag = 'scoped memory for tpu_custom_call.1']
    #allocation5 [shape = 'u8[8192]{0}', space=vmem, size = 0x2000, scoped, tag = 'output window, operand 0']
    %8 = vsyncpa [#allocation3], 0
    %s9 = scalar_lea.sflag [#allocation3], 1
    %10 = vsyncpa %s9, 0
    %11 = vsyncpa [#allocation4], 0
    %s12 = scalar_lea.sflag [#allocation4], 1
    %13 = vsyncpa %s12, 0
    loop: start=0, step=1, limit=6
    $region2: #{tpu_custom_call.1} parent=1 // loop_pre_header
      _
    $region3: #{tpu_custom_call.1} parent=1 // loop_header
      %s15 = sphi 0, %s19
      %p16 = scmp.ge.s32.totalorder %s15, 6
      %s22 = sphi 0, %s34
      %s23 = sphi 0, %s30
      %s24 = sphi 0, %s22
      %s25 = sphi 0, %s23
      %s26 = sphi 0, %s24
      %s27 = sphi 0, %s25
      %s37 = sphi 0, %s39
      %s40 = sphi 0, %s37
      %s41 = sphi 0, %s40
      %s57 = sphi 0, %s41
      %s61 = sphi 0, %s61
      %s63 = sphi 0, %s61
      %s64 = sphi 0, %s63
      %s78 = sphi 0, %s64
      %s82 = sphi 0, %s82
      %s84 = sphi 0, %s82
      %s85 = sphi 0, %s84
      %s99 = sphi 0, %s85
      %s107 = sphi 0, %s109
      %s110 = sphi 0, %s107
      %s111 = sphi 0, %s110
      %s127 = sphi 0, %s111
    $region4: #{tpu_custom_call.1} parent=1 // loop_header_branch
      %18 = sbr.rel (%p16) target = $region8
    $region5: #{tpu_custom_call.1} parent=1 // loop_body
      %s20 = ssub.s32 %s15, 1
      %s21 = ssub.s32 %s15, 2
      %s28 = sadd.s32 1, %s23
      %p29 = scmp.ge.s32.totalorder %s28, 2
      %s30 = scalar_select %p29, 0, %s28
      %s31 = sadd.s32 1, %s22
      %s32 = scalar_select %p29, %s31, %s22
      %p33 = scmp.ge.s32.totalorder %s32, 2
      %s34 = scalar_select %p33, 0, %s32
      %s35 = ssub.s32 %s22, %s34
      %p36 = scmp.eq.s32.totalorder %s35, 0
      %s38 = sadd.s32 %s37, 1
      %s39 = scalar_select %p36, %s37, %s38
      %p42 = pneg %p36
      %p43 = scmp.eq.s32.totalorder %s15, 3
      %p44 = por %p42, %p43
      %p45 = scmp.ne.s32.totalorder %s37, %s40
      %p46 = scmp.eq.s32.totalorder %s15, 0
      %p47 = por %p45, %p46
      %p48 = scmp.ne.s32.totalorder %s37, %s40
      %p49 = scmp.eq.s32.totalorder %s20, 3
      %p50 = por %p48, %p49
      %p51 = scmp.ne.s32.totalorder %s40, %s41
      %p52 = scmp.eq.s32.totalorder %s20, 0
      %p53 = por %p51, %p52
      %p54 = scmp.ne.s32.totalorder %s40, %s41
      %p55 = scmp.eq.s32.totalorder %s21, 3
      %p56 = por %p54, %p55
      %p58 = scmp.ne.s32.totalorder %s41, %s57
      %p59 = scmp.eq.s32.totalorder %s21, 0
      %p60 = por %p58, %p59
      %s62 = sadd.s32 %s61, 1
      %p65 = scmp.eq.s32.totalorder %s15, 3
      %p66 = scmp.ne.s32.totalorder %s61, %s63
      %p67 = scmp.eq.s32.totalorder %s15, 0
      %p68 = por %p66, %p67
      %p69 = scmp.ne.s32.totalorder %s61, %s63
      %p70 = scmp.eq.s32.totalorder %s20, 3
      %p71 = por %p69, %p70
      %p72 = scmp.ne.s32.totalorder %s63, %s64
      %p73 = scmp.eq.s32.totalorder %s20, 0
      %p74 = por %p72, %p73
      %p75 = scmp.ne.s32.totalorder %s63, %s64
      %p76 = scmp.eq.s32.totalorder %s21, 3
      %p77 = por %p75, %p76
      %p79 = scmp.ne.s32.totalorder %s64, %s78
      %p80 = scmp.eq.s32.totalorder %s21, 0
      %p81 = por %p79, %p80
      %s83 = sadd.s32 %s82, 1
      %p86 = scmp.eq.s32.totalorder %s15, 3
      %p87 = scmp.ne.s32.totalorder %s82, %s84
      %p88 = scmp.eq.s32.totalorder %s15, 0
      %p89 = por %p87, %p88
      %p90 = scmp.ne.s32.totalorder %s82, %s84
      %p91 = scmp.eq.s32.totalorder %s20, 3
      %p92 = por %p90, %p91
      %p93 = scmp.ne.s32.totalorder %s84, %s85
      %p94 = scmp.eq.s32.totalorder %s20, 0
      %p95 = por %p93, %p94
      %p96 = scmp.ne.s32.totalorder %s84, %s85
      %p97 = scmp.eq.s32.totalorder %s21, 3
      %p98 = por %p96, %p97
      %p100 = scmp.ne.s32.totalorder %s85, %s99
      %p101 = scmp.eq.s32.totalorder %s21, 0
      %p102 = por %p100, %p101
      %s103 = ssub.s32 %s22, %s34
      %s104 = ssub.s32 %s23, %s30
      %s105 = sor.u32 %s103, %s104
      %p106 = scmp.eq.s32.totalorder %s105, 0
      %s108 = sadd.s32 %s107, 1
      %s109 = scalar_select %p106, %s107, %s108
      %p112 = pneg %p106
      %p113 = scmp.eq.s32.totalorder %s15, 3
      %p114 = por %p112, %p113
      %p115 = scmp.ne.s32.totalorder %s107, %s110
      %p116 = scmp.eq.s32.totalorder %s15, 0
      %p117 = por %p115, %p116
      %p118 = scmp.ne.s32.totalorder %s107, %s110
      %p119 = scmp.eq.s32.totalorder %s20, 3
      %p120 = por %p118, %p119
      %p121 = scmp.ne.s32.totalorder %s110, %s111
      %p122 = scmp.eq.s32.totalorder %s20, 0
      %p123 = por %p121, %p122
      %p124 = scmp.ne.s32.totalorder %s110, %s111
      %p125 = scmp.eq.s32.totalorder %s21, 3
      %p126 = por %p124, %p125
      %p128 = scmp.ne.s32.totalorder %s111, %s127
      %p129 = scmp.eq.s32.totalorder %s21, 0
      %p130 = por %p128, %p129
      %p131 = scmp.le.s32.totalorder 1, %s15
      %p132 = scmp.lt.s32.totalorder %s15, 5
      %p133 = pnand %p131, %p132
      %p134 = pneg %p133
      // Predicated region
      $region9: #{tpu_custom_call.1} parent=5 // pred_check
        _
      $region10: #{tpu_custom_call.1} parent=5 // pred_check_branch
        %136 = sbr.rel (%p133) target = $region12
      $region11: #{tpu_custom_call.1} parent=5 // pred_region
        %s137 = ssub.s32 %s15, 1
        // Predicated region
        $region13: #{tpu_custom_call.1} parent=11 // pred_check
          %p138 = pneg %p74
        $region14: #{tpu_custom_call.1} parent=11 // pred_check_branch
          %140 = sbr.rel (%p138) target = $region16
        $region15: #{tpu_custom_call.1} parent=11 // pred_region
          _
        $region16: #{tpu_custom_call.1} parent=11 // pred_fallthru
          _
        // Predicated region
        $region17: #{tpu_custom_call.1} parent=11 // pred_check
          %p141 = pneg %p95
        $region18: #{tpu_custom_call.1} parent=11 // pred_check_branch
          %143 = sbr.rel (%p141) target = $region20
        $region19: #{tpu_custom_call.1} parent=11 // pred_region
          _
        $region20: #{tpu_custom_call.1} parent=11 // pred_fallthru
          _
      $region12: #{tpu_custom_call.1} parent=5 // pred_fallthru
        _
      %p144 = scmp.lt.s32.totalorder %s15, 4
      // Predicated region
      $region21: #{tpu_custom_call.1} parent=5 // pred_check
        %p145 = pneg %p144
      $region22: #{tpu_custom_call.1} parent=5 // pred_check_branch
        %147 = sbr.rel (%p145) target = $region24
      $region23: #{tpu_custom_call.1} parent=5 // pred_region
        // Predicated region
        $region25: #{tpu_custom_call.1} parent=23 // pred_check
          %p148 = pneg %p47
        $region26: #{tpu_custom_call.1} parent=23 // pred_check_branch
          %150 = sbr.rel (%p148) target = $region28
        $region27: #{tpu_custom_call.1} parent=23 // pred_region
          %s151 = sand.u32 %s37, 1
          %s152 = scalar_lea.sflag [#allocation3], %s151
          %s153 = sand.u32 %s37, 1
          %s154 = smul.addr %s153, 8
          %s155 = scalar_lea.vmem [#allocation2], %s154
          %157 = vsyncadd %s152, 0
          %s158 = smul.addr %s22, 4
          %s159 = smul.addr %s158, 2
          %s160 = scalar_lea.hbm %s0, %s159
          %s161 = sshll.u32 %s160, 4
          %s162 = int_to_ptr.hbm [resolvable:$true] %s161
          %s163 = sshll.u32 %s155, 4
          %s164 = int_to_ptr.vmem [resolvable:$true] %s163
          %169 = dma.hbm_to_vmem [thread:$0]  %s162, 128, %s164, %s152, 32, 32, 2
        $region28: #{tpu_custom_call.1} parent=23 // pred_fallthru
          _
      $region24: #{tpu_custom_call.1} parent=5 // pred_fallthru
        _
      %p170 = scmp.le.s32.totalorder 1, %s15
      %p171 = scmp.lt.s32.totalorder %s15, 5
      %p172 = pnand %p170, %p171
      %p173 = pneg %p172
      // Predicated region
      $region29: #{tpu_custom_call.1} parent=5 // pred_check
        _
      $region30: #{tpu_custom_call.1} parent=5 // pred_check_branch
        %175 = sbr.rel (%p172) target = $region32
      $region31: #{tpu_custom_call.1} parent=5 // pred_region
        %s176 = ssub.s32 %s15, 1
        %s177 = sand.u32 %s40, 1
        %s178 = scalar_lea.sflag [#allocation3], %s177
        %s179 = sand.u32 %s40, 1
        %s180 = smul.addr %s179, 8
        %s181 = scalar_lea.vmem [#allocation2], %s180
        // Predicated region
        $region33: #{tpu_custom_call.1} parent=31 // pred_check
          %p182 = pneg %p53
        $region34: #{tpu_custom_call.1} parent=31 // pred_check_branch
          %184 = sbr.rel (%p182) target = $region36
        $region35: #{tpu_custom_call.1} parent=31 // pred_region
          %186 = dma.done %s178, 128
        $region36: #{tpu_custom_call.1} parent=31 // pred_fallthru
          _
        %s187 = sand.u32 %s40, 1
        %s188 = scalar_lea.sflag [#allocation3], %s187
        %s189 = sand.u32 %s40, 1
        %s190 = smul.addr %s189, 8
        %s191 = scalar_lea.vmem [#allocation2], %s190
        %p192 = pneg %p53
        %p193 = pneg %p50
        %p194 = pneg %p74
        %p195 = pneg %p71
        %p196 = pneg %p95
        %p197 = pneg %p92
        %p198 = pneg %p123
        %p199 = pneg %p120
        %s200 = sand.u32 %s110, 1
        %s201 = scalar_lea.sflag [#allocation4], %s200
        %s202 = sand.u32 %s110, 1
        %s203 = smul.addr %s202, 8
        %s204 = scalar_lea.vmem [#allocation5], %s203
        %s205 = scalar_lea.vmem %s181, %s25 [#allocation2]
        %v206 = vld [vmem:[%s205] sm:$0x1]
        %v207 = vld [vmem:[%s205 + $0x2] sm:$0x1]
        %v208 = vld [vmem:[%s205 + $0x4] sm:$0x1]
        %v209 = vld [vmem:[%s205 + $0x6] sm:$0x1]
        %s210 = ssub.s32 %s25, 1
        %p211 = scmp.gt.s32.totalorder %s210, 0
        %s212 = scalar_select %p211, %s210, 0
        %s213 = scalar_lea.vmem %s181, %s212 [#allocation2]
        %v214 = vld [vmem:[%s213] sm:$0x1]
        %v215 = vld [vmem:[%s213 + $0x2] sm:$0x1]
        %v216 = vld [vmem:[%s213 + $0x4] sm:$0x1]
        %v217 = vld [vmem:[%s213 + $0x6] sm:$0x1]
        %s218 = sadd.s32 %s25, 1
        %p219 = scmp.lt.s32.totalorder %s218, 1
        %s220 = scalar_select %p219, %s218, 1
        %s221 = scalar_lea.vmem %s181, %s220 [#allocation2]
        %v222 = vld [vmem:[%s221] sm:$0x1]
        %v223 = vld [vmem:[%s221 + $0x2] sm:$0x1]
        %v224 = vld [vmem:[%s221 + $0x4] sm:$0x1]
        %v225 = vld [vmem:[%s221 + $0x6] sm:$0x1]
        %p226 = scmp.gt.s32.totalorder %s25, 0
        %s227 = scalar_select %p226, 1, 0
        %v228 = vstv %s227
        %vm229 = vcmp.eq.s32.totalorder %v228, 1
        %v230 = vsel %vm229, %v214, 0.0
        %v231 = vsel %vm229, %v215, 0.0
        %v232 = vsel %vm229, %v216, 0.0
        %v233 = vsel %vm229, %v217, 0.0
        %p234 = scmp.lt.s32.totalorder %s25, 1
        %s235 = scalar_select %p234, 1, 0
        %v236 = vstv %s235
        %vm237 = vcmp.eq.s32.totalorder %v236, 1
        %v238 = vsel %vm237, %v222, 0.0
        %v239 = vsel %vm237, %v223, 0.0
        %v240 = vsel %vm237, %v224, 0.0
        %v241 = vsel %vm237, %v225, 0.0
        %v246 = vrot.slane %v231, 7
        %vm247 = vcmask 1041409
        %v248 = vsel %vm247, %v246, %v230
        %v249 = vrot.slane %v232, 6
        %vm250 = vcmask 1042434
        %v251 = vsel %vm250, %v249, %v248
        %v252 = vrot.slane %v233, 5
        %vm253 = vcmask 1043459
        %v254 = vsel %vm253, %v252, %v251
        %255 = vrot.lane.b32.xlu0 %v254, 17
        %v256 = vpop.permute.xlu0 %255
        %v262 = vrot.slane %v207, 7
        %v263 = vsel %vm247, %v262, %v206
        %v264 = vrot.slane %v208, 6
        %v265 = vsel %vm250, %v264, %v263
        %v266 = vrot.slane %v209, 5
        %v267 = vsel %vm253, %v266, %v265
        %268 = vrot.lane.b32.xlu0 %v267, 17
        %v269 = vpop.permute.xlu0 %268
        %v275 = vrot.slane %v239, 7
        %v276 = vsel %vm247, %v275, %v238
        %v277 = vrot.slane %v240, 6
        %v278 = vsel %vm250, %v277, %v276
        %v279 = vrot.slane %v241, 5
        %v280 = vsel %vm253, %v279, %v278
        %281 = vrot.lane.b32.xlu0 %v280, 17
        %v282 = vpop.permute.xlu0 %281
        %vm284 = vcmask 7168
        %v285 = vsel %vm284, 0.0, %v256
        %vm286 = vcmask 138240
        %v287 = vsel %vm286, %v285, %v269
        %v288 = vsel %vm286, %v269, %v282
        %vm289 = vcmask 269312
        %v290 = vsel %vm289, %v288, 0.0
        %v291 = vlaneseq
        %v292 = vand.u32 %v291, 127
        %vm293 = vcmp.lt.s32.totalorder %v292, 0
        %v294 = vsub.s32 0, %v292
        %v295 = vsel %vm293, %v294, %v292
        %v296 = vshrl.u32 %v295, 4
        %v297 = vand.u32 %v295, 15
        %v298 = vsub.s32 0, %v297
        %v299 = vsel %vm293, %v298, %v297
        %vm300 = vcmp.ne.s32.totalorder %v299, 0
        %vm301 = vcmp.lt.s32.totalorder %v299, 0
        %vm302 = vmand %vm301, %vm300
        %v303 = vadd.s32 %v299, 16
        %v304 = vsel %vm302, %v303, %v299
        %vm305 = vcmp.gt.s32.totalorder %v304, 0
        %v306 = vsel %vm305, 1, 0
        %v307 = vcvt.s32.f32 %v306
        %vm308 = vcmp.lt.s32.totalorder %v304, 15
        %v309 = vsel %vm308, 1, 0
        %v310 = vcvt.s32.f32 %v309
        %v311 = vld [vmem:[%s1] sm:$0xf]
        %v312 = vmul.f32 %v287, %v307
        %314 = vset.pattern.permute.xlu0 0
        %315 = vperm.xlu0 %314, %v311
        %v316 = vpop.permute.xlu0 %315
        %v318 = vmul.f32 %v316, %v312
        %v319 = vadd.f32 %v318, 0.0
        %320 = vset.pattern.permute.xlu0 1
        %321 = vperm.xlu0 %320, %v311
        %v322 = vpop.permute.xlu0 %321
        %v324 = vmul.f32 %v322, %v287
        %v325 = vmul.f32 %v322, %v290
        %328 = vrot.lane.b32.xlu0 %v324, 127
        %v329 = vpop.permute.xlu0 %328
        %330 = vrot.lane.b32.xlu0 %v325, 127
        %v331 = vpop.permute.xlu0 %330
        %vm332 = vcmask 1039360
        %v333 = vsel %vm332, %v329, %v331
        %v335 = vadd.f32 %v319, %v333
        %337 = vrot.lane.b32.xlu0 %v310, 2
        %v338 = vpop.permute.xlu0 %337
        %v340 = vmul.f32 %v287, %v338
        %v341 = vmul.f32 %v290, %v338
        %342 = vset.pattern.permute.xlu0 2
        %343 = vperm.xlu0 %342, %v311
        %v344 = vpop.permute.xlu0 %343
        %v346 = vmul.f32 %v344, %v340
        %v347 = vmul.f32 %v344, %v341
        %350 = vrot.lane.b32.xlu0 %v346, 126
        %v351 = vpop.permute.xlu0 %350
        %352 = vrot.lane.b32.xlu0 %v347, 126
        %v353 = vpop.permute.xlu0 %352
        %vm354 = vcmask 1031168
        %v355 = vsel %vm354, %v351, %v353
        %v357 = vadd.f32 %v335, %v355
        %359 = vrot.lane.b32.xlu0 %v307, 16
        %v360 = vpop.permute.xlu0 %359
        %v362 = vmul.f32 %v287, %v360
        %v363 = vmul.f32 %v290, %v360
        %364 = vset.pattern.permute.xlu0 3
        %365 = vperm.xlu0 %364, %v311
        %v366 = vpop.permute.xlu0 %365
        %v368 = vmul.f32 %v366, %v362
        %v369 = vmul.f32 %v366, %v363
        %372 = vrot.lane.b32.xlu0 %v368, 112
        %v373 = vpop.permute.xlu0 %372
        %374 = vrot.lane.b32.xlu0 %v369, 112
        %v375 = vpop.permute.xlu0 %374
        %vm376 = vcmask 916480
        %v377 = vsel %vm376, %v373, %v375
        %v379 = vadd.f32 %v357, %v377
        %380 = vset.pattern.permute.xlu0 4
        %381 = vperm.xlu0 %380, %v311
        %v382 = vpop.permute.xlu0 %381
        %v384 = vmul.f32 %v382, %v287
        %v385 = vmul.f32 %v382, %v290
        %388 = vrot.lane.b32.xlu0 %v384, 111
        %v389 = vpop.permute.xlu0 %388
        %390 = vrot.lane.b32.xlu0 %v385, 111
        %v391 = vpop.permute.xlu0 %390
        %vm392 = vcmask 908288
        %v393 = vsel %vm392, %v389, %v391
        %v395 = vadd.f32 %v379, %v393
        %396 = vrot.lane.b32.xlu0 %v310, 18
        %v397 = vpop.permute.xlu0 %396
        %v399 = vmul.f32 %v287, %v397
        %v400 = vmul.f32 %v290, %v397
        %401 = vset.pattern.permute.xlu0 5
        %402 = vperm.xlu0 %401, %v311
        %v403 = vpop.permute.xlu0 %402
        %v405 = vmul.f32 %v403, %v399
        %v406 = vmul.f32 %v403, %v400
        %409 = vrot.lane.b32.xlu0 %v405, 110
        %v410 = vpop.permute.xlu0 %409
        %411 = vrot.lane.b32.xlu0 %v406, 110
        %v412 = vpop.permute.xlu0 %411
        %vm413 = vcmask 900096
        %v414 = vsel %vm413, %v410, %v412
        %v416 = vadd.f32 %v395, %v414
        %417 = vrot.lane.b32.xlu0 %v307, 32
        %v418 = vpop.permute.xlu0 %417
        %v420 = vmul.f32 %v287, %v418
        %v421 = vmul.f32 %v290, %v418
        %422 = vset.pattern.permute.xlu0 6
        %423 = vperm.xlu0 %422, %v311
        %v424 = vpop.permute.xlu0 %423
        %v426 = vmul.f32 %v424, %v420
        %v427 = vmul.f32 %v424, %v421
        %430 = vrot.lane.b32.xlu0 %v426, 96
        %v431 = vpop.permute.xlu0 %430
        %432 = vrot.lane.b32.xlu0 %v427, 96
        %v433 = vpop.permute.xlu0 %432
        %vm434 = vcmask 785408
        %v435 = vsel %vm434, %v431, %v433
        %v437 = vadd.f32 %v416, %v435
        %438 = vset.pattern.permute.xlu0 7
        %439 = vperm.xlu0 %438, %v311
        %v440 = vpop.permute.xlu0 %439
        %v442 = vmul.f32 %v440, %v287
        %v443 = vmul.f32 %v440, %v290
        %446 = vrot.lane.b32.xlu0 %v442, 95
        %v447 = vpop.permute.xlu0 %446
        %448 = vrot.lane.b32.xlu0 %v443, 95
        %v449 = vpop.permute.xlu0 %448
        %vm450 = vcmask 777216
        %v451 = vsel %vm450, %v447, %v449
        %v453 = vadd.f32 %v437, %v451
        %454 = vrot.lane.b32.xlu0 %v310, 34
        %v455 = vpop.permute.xlu0 %454
        %v457 = vmul.f32 %v287, %v455
        %v458 = vmul.f32 %v290, %v455
        %459 = vset.pattern.permute.xlu0 8
        %460 = vperm.xlu0 %459, %v311
        %v461 = vpop.permute.xlu0 %460
        %v463 = vmul.f32 %v461, %v457
        %v464 = vmul.f32 %v461, %v458
        %467 = vrot.lane.b32.xlu0 %v463, 94
        %v468 = vpop.permute.xlu0 %467
        %469 = vrot.lane.b32.xlu0 %v464, 94
        %v470 = vpop.permute.xlu0 %469
        %vm471 = vcmask 769024
        %v472 = vsel %vm471, %v468, %v470
        %v474 = vadd.f32 %v453, %v472
        %v475 = vld [vmem:[%s2] sm:$0xff]
        %477 = vset.pattern.permute.xlu0 0
        %478 = vperm.xlu0 %477, %v475
        %v479 = vpop.permute.xlu0 %478
        %v481 = vperm.slane %v474, 0
        %v482 = vmul.f32 %v479, %v481
        %v483 = vadd.f32 %v482, 0.0
        %484 = vset.pattern.permute.xlu0 1
        %485 = vperm.xlu0 %484, %v475
        %v486 = vpop.permute.xlu0 %485
        %v488 = vperm.slane %v474, 1
        %v489 = vmul.f32 %v486, %v488
        %v490 = vadd.f32 %v483, %v489
        %491 = vset.pattern.permute.xlu0 2
        %492 = vperm.xlu0 %491, %v475
        %v493 = vpop.permute.xlu0 %492
        %v495 = vperm.slane %v474, 2
        %v496 = vmul.f32 %v493, %v495
        %v497 = vadd.f32 %v490, %v496
        %498 = vset.pattern.permute.xlu0 3
        %499 = vperm.xlu0 %498, %v475
        %v500 = vpop.permute.xlu0 %499
        %v502 = vperm.slane %v474, 3
        %v503 = vmul.f32 %v500, %v502
        %v504 = vadd.f32 %v497, %v503
        %505 = vst [vmem:[%s204] sm:$0xff] %v504
        %s506 = sand.u32 %s110, 1
        %s507 = scalar_lea.sflag [#allocation4], %s506
        %s508 = sand.u32 %s110, 1
        %s509 = smul.addr %s508, 8
        %s510 = scalar_lea.vmem [#allocation5], %s509
        // Predicated region
        $region37: #{tpu_custom_call.1} parent=31 // pred_check
          %p511 = pneg %p120
        $region38: #{tpu_custom_call.1} parent=31 // pred_check_branch
          %513 = sbr.rel (%p511) target = $region40
        $region39: #{tpu_custom_call.1} parent=31 // pred_region
          %515 = vsyncadd %s507, 0
          %s516 = smul.addr %s24, 2
          %s517 = sadd.s32 %s25, %s516
          %s518 = smul.addr %s517, 8
          %s519 = scalar_lea.hbm %s3, %s518
          %s521 = sshll.u32 %s510, 4
          %s522 = int_to_ptr.vmem [resolvable:$true] %s521
          %s523 = sshll.u32 %s519, 4
          %s524 = int_to_ptr.hbm [resolvable:$true] %s523
          %526 = dma.vmem_to_hbm [thread:$0]  %s522, 128, %s524, %s507
        $region40: #{tpu_custom_call.1} parent=31 // pred_fallthru
          _
      $region32: #{tpu_custom_call.1} parent=5 // pred_fallthru
        _
      %p527 = scmp.le.s32.totalorder 2, %s15
      // Predicated region
      $region41: #{tpu_custom_call.1} parent=5 // pred_check
        %p528 = pneg %p527
      $region42: #{tpu_custom_call.1} parent=5 // pred_check_branch
        %530 = sbr.rel (%p528) target = $region44
      $region43: #{tpu_custom_call.1} parent=5 // pred_region
        %s531 = ssub.s32 %s15, 2
        // Predicated region
        $region45: #{tpu_custom_call.1} parent=43 // pred_check
          %p532 = pneg %p126
        $region46: #{tpu_custom_call.1} parent=43 // pred_check_branch
          %534 = sbr.rel (%p532) target = $region48
        $region47: #{tpu_custom_call.1} parent=43 // pred_region
          %s535 = sand.u32 %s111, 1
          %s536 = scalar_lea.sflag [#allocation4], %s535
          %s537 = sand.u32 %s111, 1
          %s538 = smul.addr %s537, 8
          %s539 = scalar_lea.vmem [#allocation5], %s538
          %541 = dma.done %s536, 128
        $region48: #{tpu_custom_call.1} parent=43 // pred_fallthru
          _
      $region44: #{tpu_custom_call.1} parent=5 // pred_fallthru
        _
    $region6: #{tpu_custom_call.1} parent=1 // loop_footer
      %s19 = sadd.s32 1, %s15
    $region7: #{tpu_custom_call.1} parent=1 // loop_footer_branch
      %14 = sbr.rel target = $region3
    $region8: #{tpu_custom_call.1} parent=1 // loop_exit
      _
    %542 = vsyncpa [#allocation3], 1
    %s543 = scalar_lea.sflag [#allocation3], 1
    %544 = vsyncpa %s543, 1
    %545 = vsyncpa [#allocation4], 1
    %s546 = scalar_lea.sflag [#allocation4], 1
    %547 = vsyncpa %s546, 1

</llo_original>
